<compile_context>
chip_gen: v5e
topology: v5e:2x2
jax: 0.10.0
libtpu: 0.0.40
codegen_flags: <defaults>
</compile_context>

<pallas_src>
import functools

import jax
import jax.numpy as jnp
from jax.experimental import pallas as pl
from jax.experimental.pallas import tpu as pltpu

LANES = 128
_DEFAULT_TILE_ROWS = 4096  # 4096 * 128 * 4B = 2 MiB per f32 tile


def _elu_kernel(x_ref, o_ref, *, alpha):
    x = x_ref[...].astype(jnp.float32)
    # ELU(x) = x                      if x > 0
    #          alpha * (exp(x) - 1)   if x <= 0
    neg = alpha * (jnp.exp(x) - 1.0)  # exp on EUP; select on VPU
    o_ref[...] = jnp.where(x > 0.0, x, neg).astype(o_ref.dtype)


def _min_sublanes(dtype) -> int:
    # (8,128) min tile for 32-bit, (16,128) for bf16, (32,128) for 8-bit.
    itemsize = jnp.dtype(dtype).itemsize
    return max(8, 32 // max(itemsize, 1))


def _round_up(x: int, m: int) -> int:
    return ((x + m - 1) // m) * m


def elu(
    x: jax.Array,
    alpha: float = 1.0,
    *,
    inplace: bool = False,
    tile_rows: int = _DEFAULT_TILE_ROWS,
    min_pallas_elems: int = 1 << 18,  # ~1 MiB of f32: below this, XLA wins
) -> jax.Array:
    """Elementwise ELU matching torch.nn.functional.elu(x, alpha)."""
    orig_shape = x.shape
    n = x.size
    if n == 0:
        return x

    # Fallback: tiny or lane-unaligned inputs. Avoids pallas_call launch
    # overhead and keeps the kernel path completely copy-free (no pad/slice).
    if (n % LANES != 0) or (n < min_pallas_elems):
        xf = x.astype(jnp.float32)
        return jnp.where(xf > 0.0, xf, alpha * jnp.expm1(xf)).astype(x.dtype)

    rows = n // LANES
    x2d = jnp.ravel(x).reshape(rows, LANES)  # contiguous reshape: free

    mult = _min_sublanes(x.dtype)
    tr = min(_round_up(tile_rows, mult), _round_up(rows, mult))
    grid = (pl.cdiv(rows, tr),)

    itemsize = jnp.dtype(x.dtype).itemsize
    cost = pl.CostEstimate(
        flops=4 * n, transcendentals=n, bytes_accessed=2 * n * itemsize
    )

    out2d = pl.pallas_call(
        functools.partial(_elu_kernel, alpha=float(alpha)),
        out_shape=jax.ShapeDtypeStruct((rows, LANES), x.dtype),
        grid_spec=pltpu.PrefetchScalarGridSpec(
            num_scalar_prefetch=0,
            grid=grid,
            in_specs=[pl.BlockSpec((tr, LANES), lambda i: (i, 0))],
            out_specs=pl.BlockSpec((tr, LANES), lambda i: (i, 0)),
        ),
        compiler_params=pltpu.CompilerParams(
            dimension_semantics=("parallel",),
        ),
        cost_estimate=cost,
        input_output_aliases={0: 0} if inplace else {},
    )(x2d)

    return out2d.reshape(orig_shape)


class ELU:
    """Mirror of torch.nn.ELU(alpha, inplace) for the forward pass."""

    def __init__(self, alpha: float = 1.0, inplace: bool = False):
        self.alpha = alpha
        self.inplace = inplace

    def __call__(self, x: jax.Array) -> jax.Array:
        return elu(x, self.alpha, inplace=self.inplace)


if __name__ == "__main__":
    key = jax.random.PRNGKey(0)
    k1, k2, k3 = jax.random.split(key, 3)

    # Small input consistent with the module ("any shape"), forced through the
    # Pallas path so the kernel itself is compiled and run.
    x_small = jax.random.normal(k1, (2, 4, 16, 16), dtype=jnp.float32) * 4.0
    out_small = jax.block_until_ready(elu(x_small, min_pallas_elems=0))
    ref_small = jax.nn.elu(x_small)
    assert out_small.shape == x_small.shape
    assert out_small.dtype == x_small.dtype
    assert jnp.max(jnp.abs(out_small - ref_small)) < 1e-5

    # alpha != 1.0
    out_a = jax.block_until_ready(elu(x_small, alpha=0.5, min_pallas_elems=0))
    ref_a = jnp.where(x_small > 0, x_small, 0.5 * jnp.expm1(x_small))
    assert jnp.max(jnp.abs(out_a - ref_a)) < 1e-5

    # Larger f32 input: multiple grid steps with a ragged last block
    # (rows = 5120, tile rows = 4096 -> grid of 2, second block masked).
    x_big = jax.random.normal(k2, (5, 128, 1024), dtype=jnp.float32) * 3.0
    out_big = jax.block_until_ready(elu(x_big))
    ref_big = jax.nn.elu(x_big)
    assert out_big.shape == x_big.shape
    assert jnp.max(jnp.abs(out_big - ref_big)) < 1e-5

    # bf16 path: 16-sublane minimum tile respected via _min_sublanes.
    x_bf = (jax.random.normal(k3, (2, 256, 128), dtype=jnp.float32) * 2.0).astype(
        jnp.bfloat16
    )
    out_bf = jax.block_until_ready(elu(x_bf, min_pallas_elems=0))
    ref_bf = jax.nn.elu(x_bf.astype(jnp.float32)).astype(jnp.bfloat16)
    assert out_bf.dtype == jnp.bfloat16
    assert (
        jnp.max(jnp.abs(out_bf.astype(jnp.float32) - ref_bf.astype(jnp.float32)))
        < 1e-2
    )

    print("KERNEL_OK")
</pallas_src>

<mosaic_0001>
module attributes {stable_mosaic.version = 11 : i64} {
  func.func @_elu_kernel(%arg0: i32, %arg1: memref<16x128xf32, #tpu.memory_space<vmem>>, %arg2: memref<16x128xf32, #tpu.memory_space<vmem>>) attributes {dimension_semantics = [#tpu.dimension_semantics<parallel>], iteration_bounds = array<i64: 1>, scalar_prefetch = 0 : i64, scratch_operands = 0 : i64, tpu.core_type = #tpu.core_type<tc>, window_params = [{transform_indices = @transform_0, window_bounds = array<i64: 16, 128>}, {transform_indices = @transform_1, window_bounds = array<i64: 16, 128>}]} {
    %c0 = arith.constant 0 : index
    %c0_0 = arith.constant 0 : index
    %0 = vector.load %arg1[%c0, %c0_0] : memref<16x128xf32, #tpu.memory_space<vmem>>, vector<16x128xf32>
    %1 = math.exp %0 : vector<16x128xf32>
    %cst = arith.constant 1.000000e+00 : f32
    %2 = vector.broadcast %cst : f32 to vector<16x128xf32>
    %3 = arith.subf %1, %2 : vector<16x128xf32>
    %cst_1 = arith.constant 1.000000e+00 : f32
    %4 = vector.broadcast %cst_1 : f32 to vector<16x128xf32>
    %5 = arith.mulf %4, %3 : vector<16x128xf32>
    %cst_2 = arith.constant 0.000000e+00 : f32
    %6 = vector.broadcast %cst_2 : f32 to vector<16x128xf32>
    %7 = arith.cmpf ogt, %0, %6 : vector<16x128xf32>
    %8 = arith.select %7, %0, %5 : vector<16x128xi1>, vector<16x128xf32>
    %c0_3 = arith.constant 0 : index
    %c0_4 = arith.constant 0 : index
    %9 = vector.load %arg2[%c0_3, %c0_4] : memref<16x128xf32, #tpu.memory_space<vmem>>, vector<16x128xf32>
    tpu.vector_store %arg2[%c0_3, %c0_4], %8 {strides = array<i32>} : memref<16x128xf32, #tpu.memory_space<vmem>>, vector<16x128xf32>,
    return
  }
  func.func @transform_0(%arg0: i32) -> (i32, i32) {
    %c0_i32 = arith.constant 0 : i32
    %c0_i32_0 = arith.constant 0 : i32
    return %arg0, %c0_i32 : i32, i32
  }
  func.func @transform_1(%arg0: i32) -> (i32, i32) {
    %c0_i32 = arith.constant 0 : i32
    %c0_i32_0 = arith.constant 0 : i32
    return %arg0, %c0_i32 : i32, i32
  }
}

</mosaic_0001>

<llo_original>
// kernel: tpu_custom_call.1
$region0: #{tpu_custom_call.1}
  #allocation0 [shape = 'u32[]', space=smem, size = 0x4, offset = 0x4, fixed_abs, tag = 'smem constant byte address 0x4 - core index']
  #allocation1 [shape = 'u32[72,128]{1,0:T(1,128)}', space=vmem, size = 0x9000, scoped, tag = 'internal scratch']
  %s0 = inlined_call_operand.hbm [shape: f32[16,128], index: 0, kind: input, shape index: {}]
  %s1 = inlined_call_operand.hbm [shape: f32[16,128], index: 1, kind: output, shape index: {}]
  %s2 = sld [smem:[#allocation0]]
  $region18: #{tpu_custom_call.1} parent=0
    _
  %s4 = ssub.s32 1, %s2
  %s5 = scalar_select 0, %s4, %s2
  $region1: #{tpu_custom_call.1} parent=0
    #allocation2 [shape = 'u8[8192]{0}', space=vmem, size = 0x2000, scoped, tag = 'input window, operand 0, single buffered']
    #allocation3 [shape = 's32[1]{0}', space=sflag, size = 0x4, scoped, tag = 'scoped memory for tpu_custom_call.1']
    #allocation4 [shape = 's32[1]{0}', space=sflag, size = 0x4, scoped, tag = 'scoped memory for tpu_custom_call.1']
    #allocation5 [shape = 'u8[8192]{0}', space=vmem, size = 0x2000, scoped, tag = 'output window, operand 0, single buffered']
    %6 = vsyncpa [#allocation3], 0
    %7 = vsyncpa [#allocation4], 0
    // Predicated region
    $region2: #{tpu_custom_call.1} parent=1 // pred_check
      _
    $region3: #{tpu_custom_call.1} parent=1 // pred_check_branch
      %9 = sbr.rel (0) target = $region5
    $region4: #{tpu_custom_call.1} parent=1 // pred_region
      %11 = vsyncadd [#allocation3], 0
      %s12 = sshll.u32 %s0, 4
      %s13 = int_to_ptr.hbm [resolvable:$true] %s12
      %s14 = sshll.u32 [#allocation2], 4
      %s15 = int_to_ptr.vmem [resolvable:$true] %s14
      %20 = dma.hbm_to_vmem [thread:$0]  %s13, 256, %s15, [#allocation3], 128, 128, 8
    $region5: #{tpu_custom_call.1} parent=1 // pred_fallthru
      _
    // Predicated region
    $region6: #{tpu_custom_call.1} parent=1 // pred_check
      _
    $region7: #{tpu_custom_call.1} parent=1 // pred_check_branch
      %22 = sbr.rel (0) target = $region9
    $region8: #{tpu_custom_call.1} parent=1 // pred_region
      %24 = dma.done [#allocation3], 256
    $region9: #{tpu_custom_call.1} parent=1 // pred_fallthru
      _
    %v25 = vld [vmem:[#allocation2] sm:$0xff]
    %v26 = vld [vmem:[#allocation2 + $0x8] sm:$0xff]
    %v27 = vmul.f32 %v25, 1.442695
    %v28 = vpow.pop %v27
    %v29 = vmul.f32 %v26, 1.442695
    %v30 = vpow.pop %v29
    %v31 = vsub.f32 %v28, 1.0
    %v32 = vsub.f32 %v30, 1.0
    %vm33 = vcmp.gt.f32.partialorder %v25, 0.0
    %vm34 = vcmp.gt.f32.partialorder %v26, 0.0
    %v35 = vsel %vm33, %v25, %v31
    %v36 = vsel %vm34, %v26, %v32
    %37 = vst [vmem:[#allocation5] sm:$0xff] %v35
    %38 = vst [vmem:[#allocation5 + $0x8] sm:$0xff] %v36
    // Predicated region
    $region10: #{tpu_custom_call.1} parent=1 // pred_check
      _
    $region11: #{tpu_custom_call.1} parent=1 // pred_check_branch
      %40 = sbr.rel (0) target = $region13
    $region12: #{tpu_custom_call.1} parent=1 // pred_region
      %42 = vsyncadd [#allocation4], 0
      %s43 = sshll.u32 [#allocation5], 4
      %s44 = int_to_ptr.vmem [resolvable:$true] %s43
      %s45 = sshll.u32 %s1, 4
      %s46 = int_to_ptr.hbm [resolvable:$true] %s45
      %51 = dma.vmem_to_hbm [thread:$0]  %s44, 256, %s46, [#allocation4], 128, 128, 8
    $region13: #{tpu_custom_call.1} parent=1 // pred_fallthru
      _
    // Predicated region
    $region14: #{tpu_custom_call.1} parent=1 // pred_check
      _
    $region15: #{tpu_custom_call.1} parent=1 // pred_check_branch
      %53 = sbr.rel (0) target = $region17
    $region16: #{tpu_custom_call.1} parent=1 // pred_region
      %55 = dma.done [#allocation4], 256
    $region17: #{tpu_custom_call.1} parent=1 // pred_fallthru
      _
    %56 = vsyncpa [#allocation3], 1
    %57 = vsyncpa [#allocation4], 1

</llo_original>
